<compile_context>
chip_gen: v7x
topology: tpu7x:2x2x1
jax: 0.10.0
libtpu: 0.0.40
codegen_flags: <defaults>
</compile_context>

<pallas_src>
import functools

import jax
import jax.numpy as jnp
from jax.experimental import pallas as pl
from jax.experimental.pallas import tpu as pltpu


LANE = 128
_VMEM_LIMIT = 32 * 1024 * 1024        # scoped-VMEM budget, safe on v5e/v6e/v7x
_FUSED_VMEM_BUDGET = 20 * 1024 * 1024  # threshold for the fully-fused chain path


def identity(x):
    return x


def _round_up(x, m):
    return ((x + m - 1) // m) * m


def _pick_tile(n_pad, prefs=(512, 256, 128)):
    for t in prefs:
        if n_pad % t == 0:
            return t
    return n_pad  # n_pad is always a multiple of 128, so we never get here


# ---------------------------------------------------------------------------
# Pallas kernels
# ---------------------------------------------------------------------------
def _xw_kernel(x_ref, w_ref, o_ref):
    # X @ W (f32 inputs, f32 accumulation), stored as bf16 for the aggregation.
    o_ref[...] = jnp.dot(
        x_ref[...], w_ref[...], preferred_element_type=jnp.float32
    ).astype(o_ref.dtype)


def _agg_kernel(a_ref, xw_ref, b_ref, o_ref, acc_ref):
    # Tiled A_hat @ XW with reduction axis (k) last; bias fused into finalize.
    k = pl.program_id(1)

    @pl.when(k == 0)
    def _():
        acc_ref[...] = jnp.zeros_like(acc_ref)

    acc_ref[...] += jnp.dot(
        a_ref[...], xw_ref[...], preferred_element_type=jnp.float32
    )

    @pl.when(k == pl.num_programs(1) - 1)
    def _():
        o_ref[...] = (acc_ref[...] + b_ref[...]).astype(o_ref.dtype)


def _agg_residual_kernel(a_ref, xw_ref, b_ref, r_ref, o_ref, acc_ref):
    # Same as above with the inter-layer residual fused into the finalize.
    k = pl.program_id(1)

    @pl.when(k == 0)
    def _():
        acc_ref[...] = jnp.zeros_like(acc_ref)

    acc_ref[...] += jnp.dot(
        a_ref[...], xw_ref[...], preferred_element_type=jnp.float32
    )

    @pl.when(k == pl.num_programs(1) - 1)
    def _():
        o_ref[...] = (acc_ref[...] + b_ref[...] + r_ref[...]).astype(o_ref.dtype)


def _gcn_chain_kernel(a_ref, x_ref, w_ref, b_ref, o_ref, act_ref, *,
                      depth, inter_residual):
    # Fully fused layer chain: A_hat (bf16) and the running activations stay
    # resident in VMEM for all layers; weights are a stacked (depth, C, C) ref.
    act_ref[...] = x_ref[...]
    for l in range(depth):
        h = act_ref[...]                                            # f32 (N, C)
        xw = jnp.dot(h, w_ref[l], preferred_element_type=jnp.float32)
        agg = jnp.dot(a_ref[...], xw.astype(jnp.bfloat16),
                      preferred_element_type=jnp.float32)
        out = agg + b_ref[l]
        if inter_residual:
            out = out + h
        act_ref[...] = out
    o_ref[...] = act_ref[...].astype(o_ref.dtype)


# ---------------------------------------------------------------------------
# Per-layer tiled path
# ---------------------------------------------------------------------------
def gcn_layer_tiled(a_hat_bf16, x_pad, w_pad, b_pad, residual=None):
    """One GCNConv layer: A_hat @ (x @ w) + b (+ residual), tiled & pipelined."""
    n_pad, c_pad = x_pad.shape

    # ---- X @ W pre-pass (done once, NOT re-run per aggregation row-tile) ----
    tmx = _pick_tile(n_pad)
    xw = pl.pallas_call(
        _xw_kernel,
        out_shape=jax.ShapeDtypeStruct((n_pad, c_pad), jnp.bfloat16),
        grid=(n_pad // tmx,),
        in_specs=[
            pl.BlockSpec((tmx, c_pad), lambda i: (i, 0)),
            pl.BlockSpec((c_pad, c_pad), lambda i: (0, 0)),
        ],
        out_specs=pl.BlockSpec((tmx, c_pad), lambda i: (i, 0)),
        compiler_params=pltpu.CompilerParams(
            dimension_semantics=("parallel",), vmem_limit_bytes=_VMEM_LIMIT
        ),
        cost_estimate=pl.CostEstimate(
            flops=2 * n_pad * c_pad * c_pad,
            transcendentals=0,
            bytes_accessed=n_pad * c_pad * 4 + c_pad * c_pad * 4
            + n_pad * c_pad * 2,
        ),
    )(x_pad, w_pad)

    # ---- tiled aggregation: A_hat @ XW, reduction axis last ----
    tm = _pick_tile(n_pad, prefs=(256, 512, 128))   # row tiles (parallel axis)
    tk = _pick_tile(n_pad, prefs=(512, 256, 128))   # reduction tiles
    grid = (n_pad // tm, n_pad // tk)

    a_spec = pl.BlockSpec((tm, tk), lambda i, k: (i, k))
    xw_spec = pl.BlockSpec((tk, c_pad), lambda i, k: (k, 0))
    b_spec = pl.BlockSpec((1, c_pad), lambda i, k: (0, 0))
    out_spec = pl.BlockSpec((tm, c_pad), lambda i, k: (i, 0))

    bytes_accessed = (
        n_pad * n_pad * 2
        + (n_pad // tm) * n_pad * c_pad * 2
        + n_pad * c_pad * 4
        + (n_pad * c_pad * 4 if residual is not None else 0)
    )
    cost = pl.CostEstimate(
        flops=2 * n_pad * n_pad * c_pad,
        transcendentals=0,
        bytes_accessed=bytes_accessed,
    )
    cparams = pltpu.CompilerParams(
        dimension_semantics=("parallel", "arbitrary"),
        vmem_limit_bytes=_VMEM_LIMIT,
    )
    out_shape = jax.ShapeDtypeStruct((n_pad, c_pad), jnp.float32)
    scratch = [pltpu.VMEM((tm, c_pad), jnp.float32)]

    if residual is None:
        return pl.pallas_call(
            _agg_kernel,
            out_shape=out_shape,
            grid=grid,
            in_specs=[a_spec, xw_spec, b_spec],
            out_specs=out_spec,
            scratch_shapes=scratch,
            compiler_params=cparams,
            cost_estimate=cost,
        )(a_hat_bf16, xw, b_pad)
    else:
        r_spec = pl.BlockSpec((tm, c_pad), lambda i, k: (i, 0))
        return pl.pallas_call(
            _agg_residual_kernel,
            out_shape=out_shape,
            grid=grid,
            in_specs=[a_spec, xw_spec, b_spec, r_spec],
            out_specs=out_spec,
            scratch_shapes=scratch,
            compiler_params=cparams,
            cost_estimate=cost,
        )(a_hat_bf16, xw, b_pad, residual)


# ---------------------------------------------------------------------------
# Plain-JAX glue: gcn_norm (dense), parameter init, block forward
# ---------------------------------------------------------------------------
def build_gcn_norm_adj(edge_index, edge_weight, num_nodes, improved=True):
    """Dense PyG gcn_norm: A_hat = D^{-1/2} (A + fill*I) D^{-1/2}."""
    src = edge_index[0]
    dst = edge_index[1]
    if edge_weight is None:
        edge_weight = jnp.ones(src.shape[0], dtype=jnp.float32)
    adj = jnp.zeros((num_nodes, num_nodes), dtype=jnp.float32)
    adj = adj.at[dst, src].add(edge_weight)       # A[dst, src] = w(src->dst)
    fill = 2.0 if improved else 1.0
    adj = adj + fill * jnp.eye(num_nodes, dtype=jnp.float32)
    deg = adj.sum(axis=1)
    deg_inv_sqrt = jnp.where(deg > 0.0, 1.0 / jnp.sqrt(deg), 0.0)
    return adj * deg_inv_sqrt[:, None] * deg_inv_sqrt[None, :]


def glorot(key, fan_in, fan_out):
    limit = jnp.sqrt(6.0 / (fan_in + fan_out))
    return jax.random.uniform(
        key, (fan_in, fan_out), dtype=jnp.float32, minval=-limit, maxval=limit
    )


def init_gcn_block_params(key, in_channels, hidden_channels, out_channels, depth):
    dims = []
    if depth > 1:
        dims.append((in_channels, hidden_channels))
        for _ in range(1, depth - 1):
            dims.append((hidden_channels, hidden_channels))
        dims.append((hidden_channels, out_channels))
    else:
        dims.append((in_channels, out_channels))
    params = []
    for (ci, co) in dims:
        key, sub = jax.random.split(key)
        params.append(
            {"w": glorot(sub, ci, co), "b": jnp.zeros((co,), dtype=jnp.float32)}
        )
    return params


def gcn_block_forward(
    params,
    x,
    edge_index,
    edge_weight=None,
    inter_residual_connection=False,
    global_residual_connection=False,
    out_act=identity,
    inter_act=identity,
    force_tiled=False,
):
    """Mirrors GCNBlock.forward (chain of improved GCNConv + optional residuals)."""
    n, in_ch = x.shape
    depth = len(params)
    out_ch = params[-1]["w"].shape[1]

    # Single padded lane width for the whole chain (lane-dense outputs).
    c_max = max([in_ch] + [p["w"].shape[1] for p in params])
    c_pad = _round_up(c_max, LANE)
    n_pad = _round_up(n, LANE)

    a_hat = build_gcn_norm_adj(edge_index, edge_weight, n, improved=True)
    a_pad = jnp.pad(a_hat, ((0, n_pad - n), (0, n_pad - n))).astype(jnp.bfloat16)
    x_pad = jnp.pad(x.astype(jnp.float32), ((0, n_pad - n), (0, c_pad - in_ch)))

    w_pads, b_pads = [], []
    for p in params:
        ci, co = p["w"].shape
        w_pads.append(jnp.pad(p["w"], ((0, c_pad - ci), (0, c_pad - co))))
        b_pads.append(jnp.pad(p["b"], (0, c_pad - co)).reshape(1, c_pad))

    fused_bytes = (
        n_pad * n_pad * 2
        + 3 * n_pad * c_pad * 4
        + depth * c_pad * c_pad * 4
        + depth * c_pad * 4
    )
    use_fused = (
        (not force_tiled)
        and (inter_act is identity)
        and fused_bytes <= _FUSED_VMEM_BUDGET
    )

    if use_fused:
        w_stack = jnp.stack(w_pads)                       # (depth, C, C)
        b_stack = jnp.stack(b_pads)                       # (depth, 1, C)
        out_pad = pl.pallas_call(
            functools.partial(
                _gcn_chain_kernel,
                depth=depth,
                inter_residual=inter_residual_connection,
            ),
            out_shape=jax.ShapeDtypeStruct((n_pad, c_pad), jnp.float32),
            in_specs=[pl.BlockSpec(memory_space=pltpu.MemorySpace.VMEM)] * 4,
            out_specs=pl.BlockSpec(memory_space=pltpu.MemorySpace.VMEM),
            scratch_shapes=[pltpu.VMEM((n_pad, c_pad), jnp.float32)],
            compiler_params=pltpu.CompilerParams(vmem_limit_bytes=_VMEM_LIMIT),
            cost_estimate=pl.CostEstimate(
                flops=depth * (2 * n_pad * c_pad * c_pad + 2 * n_pad * n_pad * c_pad),
                transcendentals=0,
                bytes_accessed=n_pad * n_pad * 2
                + 2 * n_pad * c_pad * 4
                + depth * c_pad * c_pad * 4,
            ),
        )(a_pad, x_pad, w_stack, b_stack)
    else:
        out_pad = x_pad
        for l in range(depth):
            h = out_pad
            fuse_res = (
                inter_residual_connection
                and inter_act is identity
                and params[l]["w"].shape[0] == params[l]["w"].shape[1]
            )
            layer = gcn_layer_tiled(
                a_pad,
                out_pad,
                w_pads[l],
                b_pads[l],
                residual=h if fuse_res else None,
            )
            if not fuse_res:
                layer = inter_act(layer)
                if inter_residual_connection:
                    layer = layer + h
            out_pad = layer

    if global_residual_connection:
        out_pad = out_pad + x_pad

    out = out_pad[:n, :out_ch]
    return out_act(out)


# ---------------------------------------------------------------------------
# Reference (pure JAX, f32, dense) for sanity checks
# ---------------------------------------------------------------------------
def gcn_block_reference(
    params,
    x,
    edge_index,
    edge_weight=None,
    inter_residual_connection=False,
    global_residual_connection=False,
    out_act=identity,
    inter_act=identity,
):
    n = x.shape[0]
    a_hat = build_gcn_norm_adj(edge_index, edge_weight, n, improved=True)
    gid = x
    out = x
    for p in params:
        h = out
        out = inter_act(a_hat @ (out @ p["w"]) + p["b"][None, :])
        if inter_residual_connection:
            out = out + h
    if global_residual_connection:
        out = out + gid
    return out_act(out)


if __name__ == "__main__":
    key = jax.random.PRNGKey(0)

    def ring_edge_index(num_nodes):
        s = jnp.arange(num_nodes, dtype=jnp.int32)
        d = (s + 1) % num_nodes
        return jnp.stack(
            [jnp.concatenate([s, d]), jnp.concatenate([d, s])], axis=0
        )

    # --- Test 1: small graph, default flags; fused-chain and tiled paths ----
    n1, cin, chid, cout, depth = 16, 8, 16, 8, 2
    ei1 = ring_edge_index(n1)
    key, kx, kp = jax.random.split(key, 3)
    x1 = jax.random.normal(kx, (n1, cin), dtype=jnp.float32)
    params1 = init_gcn_block_params(kp, cin, chid, cout, depth)

    out_fused = jax.block_until_ready(gcn_block_forward(params1, x1, ei1))
    out_tiled = jax.block_until_ready(
        gcn_block_forward(params1, x1, ei1, force_tiled=True)
    )
    ref1 = gcn_block_reference(params1, x1, ei1)
    assert out_fused.shape == (n1, cout)
    assert jnp.allclose(out_fused, ref1, atol=2e-2, rtol=2e-2)
    assert jnp.allclose(out_tiled, ref1, atol=2e-2, rtol=2e-2)

    # --- Test 2: larger graph -> multi-tile reduction grid ------------------
    n2 = 300
    ei2 = ring_edge_index(n2)
    key, kx2, kp2 = jax.random.split(key, 3)
    x2 = jax.random.normal(kx2, (n2, cin), dtype=jnp.float32)
    params2 = init_gcn_block_params(kp2, cin, chid, cout, depth)
    out2 = jax.block_until_ready(
        gcn_block_forward(params2, x2, ei2, force_tiled=True)
    )
    ref2 = gcn_block_reference(params2, x2, ei2)
    assert jnp.allclose(out2, ref2, atol=2e-2, rtol=2e-2)

    # --- Test 3: residual connections (fused residual epilogue) -------------
    n3, c3, depth3 = 64, 8, 3
    ei3 = ring_edge_index(n3)
    key, kx3, kp3 = jax.random.split(key, 3)
    x3 = jax.random.normal(kx3, (n3, c3), dtype=jnp.float32)
    params3 = init_gcn_block_params(kp3, c3, c3, c3, depth3)
    kwargs = dict(
        inter_residual_connection=True,
        global_residual_connection=True,
        out_act=jnp.tanh,
    )
    out3_f = jax.block_until_ready(gcn_block_forward(params3, x3, ei3, **kwargs))
    out3_t = jax.block_until_ready(
        gcn_block_forward(params3, x3, ei3, force_tiled=True, **kwargs)
    )
    ref3 = gcn_block_reference(params3, x3, ei3, **kwargs)
    assert jnp.allclose(out3_f, ref3, atol=2e-2, rtol=2e-2)
    assert jnp.allclose(out3_t, ref3, atol=2e-2, rtol=2e-2)

    print("KERNEL_OK")
</pallas_src>

<mosaic_0001>
module attributes {stable_mosaic.version = 11 : i64} {
  func.func @_gcn_chain_kernel(%arg0: memref<128x128xbf16, #tpu.memory_space<vmem>>, %arg1: memref<128x128xf32, #tpu.memory_space<vmem>>, %arg2: memref<2x128x128xf32, #tpu.memory_space<vmem>>, %arg3: memref<2x1x128xf32, #tpu.memory_space<vmem>>, %arg4: memref<128x128xf32, #tpu.memory_space<vmem>>, %arg5: memref<128x128xf32, #tpu.memory_space<vmem>>) attributes {dimension_semantics = [], scalar_prefetch = 0 : i64, scratch_operands = 1 : i64, tpu.core_type = #tpu.core_type<tc>} {
    %c0 = arith.constant 0 : index
    %c0_0 = arith.constant 0 : index
    %0 = vector.load %arg1[%c0, %c0_0] : memref<128x128xf32, #tpu.memory_space<vmem>>, vector<128x128xf32>
    %c0_1 = arith.constant 0 : index
    %c0_2 = arith.constant 0 : index
    %1 = vector.load %arg5[%c0_1, %c0_2] : memref<128x128xf32, #tpu.memory_space<vmem>>, vector<128x128xf32>
    tpu.vector_store %arg5[%c0_1, %c0_2], %0 {strides = array<i32>} : memref<128x128xf32, #tpu.memory_space<vmem>>, vector<128x128xf32>,
    %c0_3 = arith.constant 0 : index
    %c0_4 = arith.constant 0 : index
    %2 = vector.load %arg5[%c0_3, %c0_4] : memref<128x128xf32, #tpu.memory_space<vmem>>, vector<128x128xf32>
    %c0_5 = arith.constant 0 : index
    %c0_6 = arith.constant 0 : index
    %c0_7 = arith.constant 0 : index
    %3 = vector.load %arg2[%c0_5, %c0_6, %c0_7] : memref<2x128x128xf32, #tpu.memory_space<vmem>>, vector<1x128x128xf32>
    %4 = vector.shape_cast %3 : vector<1x128x128xf32> to vector<128x128xf32>
    %cst = arith.constant dense<0.000000e+00> : vector<128x128xf32>
    %5 = tpu.matmul %2, %4, %cst {dimension_numbers = #tpu.dot_dimension_numbers<[1], [0], [0], [1], [0, 0, 1, 1], [], []>} : vector<128x128xf32>, vector<128x128xf32>, vector<128x128xf32> -> vector<128x128xf32>
    %c0_8 = arith.constant 0 : index
    %c0_9 = arith.constant 0 : index
    %6 = vector.load %arg0[%c0_8, %c0_9] : memref<128x128xbf16, #tpu.memory_space<vmem>>, vector<128x128xbf16>
    %7 = arith.truncf %5 : vector<128x128xf32> to vector<128x128xbf16>
    %cst_10 = arith.constant dense<0.000000e+00> : vector<128x128xf32>
    %8 = tpu.matmul %6, %7, %cst_10 {dimension_numbers = #tpu.dot_dimension_numbers<[1], [0], [0], [1], [0, 0, 1, 1], [], []>} : vector<128x128xbf16>, vector<128x128xbf16>, vector<128x128xf32> -> vector<128x128xf32>
    %c0_11 = arith.constant 0 : index
    %c0_12 = arith.constant 0 : index
    %c0_13 = arith.constant 0 : index
    %9 = vector.load %arg3[%c0_11, %c0_12, %c0_13] : memref<2x1x128xf32, #tpu.memory_space<vmem>>, vector<1x1x128xf32>
    %10 = vector.shape_cast %9 : vector<1x1x128xf32> to vector<1x128xf32>
    %11 = vector.broadcast %10 : vector<1x128xf32> to vector<128x128xf32>
    %12 = arith.addf %8, %11 : vector<128x128xf32>
    %c0_14 = arith.constant 0 : index
    %c0_15 = arith.constant 0 : index
    %13 = vector.load %arg5[%c0_14, %c0_15] : memref<128x128xf32, #tpu.memory_space<vmem>>, vector<128x128xf32>
    tpu.vector_store %arg5[%c0_14, %c0_15], %12 {strides = array<i32>} : memref<128x128xf32, #tpu.memory_space<vmem>>, vector<128x128xf32>,
    %c0_16 = arith.constant 0 : index
    %c0_17 = arith.constant 0 : index
    %14 = vector.load %arg5[%c0_16, %c0_17] : memref<128x128xf32, #tpu.memory_space<vmem>>, vector<128x128xf32>
    %c1 = arith.constant 1 : index
    %c0_18 = arith.constant 0 : index
    %c0_19 = arith.constant 0 : index
    %15 = vector.load %arg2[%c1, %c0_18, %c0_19] : memref<2x128x128xf32, #tpu.memory_space<vmem>>, vector<1x128x128xf32>
    %16 = vector.shape_cast %15 : vector<1x128x128xf32> to vector<128x128xf32>
    %cst_20 = arith.constant dense<0.000000e+00> : vector<128x128xf32>
    %17 = tpu.matmul %14, %16, %cst_20 {dimension_numbers = #tpu.dot_dimension_numbers<[1], [0], [0], [1], [0, 0, 1, 1], [], []>} : vector<128x128xf32>, vector<128x128xf32>, vector<128x128xf32> -> vector<128x128xf32>
    %c0_21 = arith.constant 0 : index
    %c0_22 = arith.constant 0 : index
    %18 = vector.load %arg0[%c0_21, %c0_22] : memref<128x128xbf16, #tpu.memory_space<vmem>>, vector<128x128xbf16>
    %19 = arith.truncf %17 : vector<128x128xf32> to vector<128x128xbf16>
    %cst_23 = arith.constant dense<0.000000e+00> : vector<128x128xf32>
    %20 = tpu.matmul %18, %19, %cst_23 {dimension_numbers = #tpu.dot_dimension_numbers<[1], [0], [0], [1], [0, 0, 1, 1], [], []>} : vector<128x128xbf16>, vector<128x128xbf16>, vector<128x128xf32> -> vector<128x128xf32>
    %c1_24 = arith.constant 1 : index
    %c0_25 = arith.constant 0 : index
    %c0_26 = arith.constant 0 : index
    %21 = vector.load %arg3[%c1_24, %c0_25, %c0_26] : memref<2x1x128xf32, #tpu.memory_space<vmem>>, vector<1x1x128xf32>
    %22 = vector.shape_cast %21 : vector<1x1x128xf32> to vector<1x128xf32>
    %23 = vector.broadcast %22 : vector<1x128xf32> to vector<128x128xf32>
    %24 = arith.addf %20, %23 : vector<128x128xf32>
    %c0_27 = arith.constant 0 : index
    %c0_28 = arith.constant 0 : index
    %25 = vector.load %arg5[%c0_27, %c0_28] : memref<128x128xf32, #tpu.memory_space<vmem>>, vector<128x128xf32>
    tpu.vector_store %arg5[%c0_27, %c0_28], %24 {strides = array<i32>} : memref<128x128xf32, #tpu.memory_space<vmem>>, vector<128x128xf32>,
    %c0_29 = arith.constant 0 : index
    %c0_30 = arith.constant 0 : index
    %26 = vector.load %arg5[%c0_29, %c0_30] : memref<128x128xf32, #tpu.memory_space<vmem>>, vector<128x128xf32>
    %c0_31 = arith.constant 0 : index
    %c0_32 = arith.constant 0 : index
    %27 = vector.load %arg4[%c0_31, %c0_32] : memref<128x128xf32, #tpu.memory_space<vmem>>, vector<128x128xf32>
    tpu.vector_store %arg4[%c0_31, %c0_32], %26 {strides = array<i32>} : memref<128x128xf32, #tpu.memory_space<vmem>>, vector<128x128xf32>,
    return
  }
}

</mosaic_0001>

<llo_original>
// kernel: tpu_custom_call.1
$region0: #{tpu_custom_call.1}
  #allocation0 [shape = 'u32[]', space=smem, size = 0x4, offset = 0x4, fixed_abs, tag = 'smem constant byte address 0x4 - core index']
  #allocation1 [shape = 'u32[144,128]{1,0:T(1,128)}', space=vmem, size = 0x12000, scoped, tag = 'internal scratch']
  #allocation2 [shape = 'f32[128,128]{1,0:T(8,128)}', space=vmem, size = 0x10000, scoped, tag = 'scratch operand']
  %s0 = inlined_call_operand.hbm [shape: bf16[128,128], index: 0, kind: input, shape index: {}]
  %s1 = inlined_call_operand.hbm [shape: f32[128,128], index: 1, kind: input, shape index: {}]
  %s2 = inlined_call_operand.hbm [shape: f32[2,128,128], index: 2, kind: input, shape index: {}]
  %s3 = inlined_call_operand.vmem [shape: f32[2,1,128], index: 3, kind: input, shape index: {}]
  %s4 = inlined_call_operand.hbm [shape: f32[128,128], index: 4, kind: output, shape index: {}]
  %s5 = sld [smem:[#allocation0]]
  $region38: #{tpu_custom_call.1} parent=0
    _
  %s7 = ssub.s32 1, %s5
  %s8 = scalar_select 0, %s7, %s5
  $region1: #{tpu_custom_call.1} parent=0
    #allocation3 [shape = 'u8[32768]{0}', space=vmem, size = 0x8000, scoped, tag = 'input window, operand 0, single buffered']
    #allocation4 [shape = 's32[1]{0}', space=sflag, size = 0x4, scoped, tag = 'scoped memory for tpu_custom_call.1']
    #allocation5 [shape = 's32[1]{0}', space=sflag, size = 0x4, scoped, tag = 'scoped memory for tpu_custom_call.1']
    #allocation6 [shape = 'u8[65536]{0}', space=vmem, size = 0x10000, scoped, tag = 'input window, operand 1, single buffered']
    #allocation7 [shape = 's32[1]{0}', space=sflag, size = 0x4, scoped, tag = 'scoped memory for tpu_custom_call.1']
    #allocation8 [shape = 'u8[131072]{0}', space=vmem, size = 0x20000, scoped, tag = 'input window, operand 2, single buffered']
    #allocation9 [shape = 'u8[65536]{0}', space=vmem, size = 0x10000, scoped, tag = 'output window, operand 0, single buffered']
    %9 = vsyncpa [#allocation4], 0
    %10 = vsyncpa [#allocation7], 0
    %11 = vsyncpa [#allocation5], 0
    // Predicated region
    $region2: #{tpu_custom_call.1} parent=1 // pred_check
      _
    $region3: #{tpu_custom_call.1} parent=1 // pred_check_branch
      %13 = sbr.rel (0) target = $region5
    $region4: #{tpu_custom_call.1} parent=1 // pred_region
      %s15 = ssub.s32 1024, 1024
      %16 = vsyncadd [#allocation4], %s15
      %s17 = sshll.u32 [#allocation3], 4
      %s18 = int_to_ptr.vmem [resolvable:$true] %s17
      %23 = dma.hbm_to_vmem [thread:$0]  %s0, 1024, %s18, [#allocation4], 64, 64, 4
    $region5: #{tpu_custom_call.1} parent=1 // pred_fallthru
      _
    // Predicated region
    $region6: #{tpu_custom_call.1} parent=1 // pred_check
      _
    $region7: #{tpu_custom_call.1} parent=1 // pred_check_branch
      %25 = sbr.rel (0) target = $region9
    $region8: #{tpu_custom_call.1} parent=1 // pred_region
      %s27 = ssub.s32 2048, 2048
      %28 = vsyncadd [#allocation7], %s27
      %s29 = sshll.u32 [#allocation6], 4
      %s30 = int_to_ptr.vmem [resolvable:$true] %s29
      %35 = dma.hbm_to_vmem [thread:$0]  %s1, 2048, %s30, [#allocation7], 128, 128, 8
    $region9: #{tpu_custom_call.1} parent=1 // pred_fallthru
      _
    // Predicated region
    $region10: #{tpu_custom_call.1} parent=1 // pred_check
      _
    $region11: #{tpu_custom_call.1} parent=1 // pred_check_branch
      %37 = sbr.rel (0) target = $region13
    $region12: #{tpu_custom_call.1} parent=1 // pred_region
      %s39 = ssub.s32 4096, 4096
      %40 = vsyncadd [#allocation7], %s39
      %s41 = sshll.u32 [#allocation8], 4
      %s42 = int_to_ptr.vmem [resolvable:$true] %s41
      %47 = dma.hbm_to_vmem [thread:$0]  %s2, 4096, %s42, [#allocation7], 128, 128, 8
    $region13: #{tpu_custom_call.1} parent=1 // pred_fallthru
      _
    // Predicated region
    $region14: #{tpu_custom_call.1} parent=1 // pred_check
      _
    $region15: #{tpu_custom_call.1} parent=1 // pred_check_branch
      %49 = sbr.rel (0) target = $region17
    $region16: #{tpu_custom_call.1} parent=1 // pred_region
      _
    $region17: #{tpu_custom_call.1} parent=1 // pred_fallthru
      _
    // Predicated region
    $region18: #{tpu_custom_call.1} parent=1 // pred_check
      _
    $region19: #{tpu_custom_call.1} parent=1 // pred_check_branch
      %51 = sbr.rel (0) target = $region21
    $region20: #{tpu_custom_call.1} parent=1 // pred_region
      %52 = dma.done [#allocation4], 1024
    $region21: #{tpu_custom_call.1} parent=1 // pred_fallthru
      _
    // Predicated region
    $region22: #{tpu_custom_call.1} parent=1 // pred_check
      _
    $region23: #{tpu_custom_call.1} parent=1 // pred_check_branch
      %54 = sbr.rel (0) target = $region25
    $region24: #{tpu_custom_call.1} parent=1 // pred_region
      %55 = dma.done [#allocation7], 2048
    $region25: #{tpu_custom_call.1} parent=1 // pred_fallthru
      _
    // Predicated region
    $region26: #{tpu_custom_call.1} parent=1 // pred_check
      _
    $region27: #{tpu_custom_call.1} parent=1 // pred_check_branch
      %57 = sbr.rel (0) target = $region29
    $region28: #{tpu_custom_call.1} parent=1 // pred_region
      %58 = dma.done [#allocation7], 4096
    $region29: #{tpu_custom_call.1} parent=1 // pred_fallthru
      _
    %v60 = vld [vmem:[#allocation6] sm:$0xff]
    %v61 = vld [vmem:[#allocation6 + $0x8] sm:$0xff]
    %v62 = vld [vmem:[#allocation6 + $0x10] sm:$0xff]
    %v63 = vld [vmem:[#allocation6 + $0x18] sm:$0xff]
    %v64 = vld [vmem:[#allocation6 + $0x20] sm:$0xff]
    %v65 = vld [vmem:[#allocation6 + $0x28] sm:$0xff]
    %v66 = vld [vmem:[#allocation6 + $0x30] sm:$0xff]
    %v67 = vld [vmem:[#allocation6 + $0x38] sm:$0xff]
    %v68 = vld [vmem:[#allocation6 + $0x40] sm:$0xff]
    %v69 = vld [vmem:[#allocation6 + $0x48] sm:$0xff]
    %v70 = vld [vmem:[#allocation6 + $0x50] sm:$0xff]
    %v71 = vld [vmem:[#allocation6 + $0x58] sm:$0xff]
    %v72 = vld [vmem:[#allocation6 + $0x60] sm:$0xff]
    %v73 = vld [vmem:[#allocation6 + $0x68] sm:$0xff]
    %v74 = vld [vmem:[#allocation6 + $0x70] sm:$0xff]
    %v75 = vld [vmem:[#allocation6 + $0x78] sm:$0xff]
    %76 = vst [vmem:[#allocation2] sm:$0xff] %v60
    %77 = vst [vmem:[#allocation2 + $0x8] sm:$0xff] %v61
    %78 = vst [vmem:[#allocation2 + $0x10] sm:$0xff] %v62
    %79 = vst [vmem:[#allocation2 + $0x18] sm:$0xff] %v63
    %80 = vst [vmem:[#allocation2 + $0x20] sm:$0xff] %v64
    %81 = vst [vmem:[#allocation2 + $0x28] sm:$0xff] %v65
    %82 = vst [vmem:[#allocation2 + $0x30] sm:$0xff] %v66
    %83 = vst [vmem:[#allocation2 + $0x38] sm:$0xff] %v67
    %84 = vst [vmem:[#allocation2 + $0x40] sm:$0xff] %v68
    %85 = vst [vmem:[#allocation2 + $0x48] sm:$0xff] %v69
    %86 = vst [vmem:[#allocation2 + $0x50] sm:$0xff] %v70
    %87 = vst [vmem:[#allocation2 + $0x58] sm:$0xff] %v71
    %88 = vst [vmem:[#allocation2 + $0x60] sm:$0xff] %v72
    %89 = vst [vmem:[#allocation2 + $0x68] sm:$0xff] %v73
    %90 = vst [vmem:[#allocation2 + $0x70] sm:$0xff] %v74
    %91 = vst [vmem:[#allocation2 + $0x78] sm:$0xff] %v75
    %v92 = vld [vmem:[#allocation2] sm:$0xff]
    %v93 = vld [vmem:[#allocation2 + $0x8] sm:$0xff]
    %v94 = vld [vmem:[#allocation2 + $0x10] sm:$0xff]
    %v95 = vld [vmem:[#allocation2 + $0x18] sm:$0xff]
    %v96 = vld [vmem:[#allocation2 + $0x20] sm:$0xff]
    %v97 = vld [vmem:[#allocation2 + $0x28] sm:$0xff]
    %v98 = vld [vmem:[#allocation2 + $0x30] sm:$0xff]
    %v99 = vld [vmem:[#allocation2 + $0x38] sm:$0xff]
    %v100 = vld [vmem:[#allocation2 + $0x40] sm:$0xff]
    %v101 = vld [vmem:[#allocation2 + $0x48] sm:$0xff]
    %v102 = vld [vmem:[#allocation2 + $0x50] sm:$0xff]
    %v103 = vld [vmem:[#allocation2 + $0x58] sm:$0xff]
    %v104 = vld [vmem:[#allocation2 + $0x60] sm:$0xff]
    %v105 = vld [vmem:[#allocation2 + $0x68] sm:$0xff]
    %v106 = vld [vmem:[#allocation2 + $0x70] sm:$0xff]
    %v107 = vld [vmem:[#allocation2 + $0x78] sm:$0xff]
    %v108 = vld [vmem:[#allocation8] sm:$0xff]
    %v109 = vld [vmem:[#allocation8 + $0x8] sm:$0xff]
    %v110 = vld [vmem:[#allocation8 + $0x10] sm:$0xff]
    %v111 = vld [vmem:[#allocation8 + $0x18] sm:$0xff]
    %v112 = vld [vmem:[#allocation8 + $0x20] sm:$0xff]
    %v113 = vld [vmem:[#allocation8 + $0x28] sm:$0xff]
    %v114 = vld [vmem:[#allocation8 + $0x30] sm:$0xff]
    %v115 = vld [vmem:[#allocation8 + $0x38] sm:$0xff]
    %v116 = vld [vmem:[#allocation8 + $0x40] sm:$0xff]
    %v117 = vld [vmem:[#allocation8 + $0x48] sm:$0xff]
    %v118 = vld [vmem:[#allocation8 + $0x50] sm:$0xff]
    %v119 = vld [vmem:[#allocation8 + $0x58] sm:$0xff]
    %v120 = vld [vmem:[#allocation8 + $0x60] sm:$0xff]
    %v121 = vld [vmem:[#allocation8 + $0x68] sm:$0xff]
    %v122 = vld [vmem:[#allocation8 + $0x70] sm:$0xff]
    %v123 = vld [vmem:[#allocation8 + $0x78] sm:$0xff]
    %124 = vmatprep.subr.mxu0 0.0
    %125 = vmatpush1.msra.mxu0 %v108
    %126 = vmatprep.subr.mxu0 0.0
    %127 = vmatpush1.msra.mxu0 %v109
    %128 = vmatprep.subr.mxu0 0.0
    %129 = vmatpush1.msra.mxu0 %v110
    %130 = vmatprep.subr.mxu0 0.0
    %131 = vmatpush1.msra.mxu0 %v111
    %132 = vmatprep.subr.mxu0 0.0
    %133 = vmatpush1.msra.mxu0 %v112
    %134 = vmatprep.subr.mxu0 0.0
    %135 = vmatpush1.msra.mxu0 %v113
    %136 = vmatprep.subr.mxu0 0.0
    %137 = vmatpush1.msra.mxu0 %v114
    %138 = vmatprep.subr.mxu0 0.0
    %139 = vmatpush1.msra.mxu0 %v115
    %140 = vmatprep.subr.mxu0 0.0
    %141 = vmatpush1.msra.mxu0 %v116
    %142 = vmatprep.subr.mxu0 0.0
    %143 = vmatpush1.msra.mxu0 %v117
    %144 = vmatprep.subr.mxu0 0.0
    %145 = vmatpush1.msra.mxu0 %v118
    %146 = vmatprep.subr.mxu0 0.0
    %147 = vmatpush1.msra.mxu0 %v119
    %148 = vmatprep.subr.mxu0 0.0
    %149 = vmatpush1.msra.mxu0 %v120
    %150 = vmatprep.subr.mxu0 0.0
    %151 = vmatpush1.msra.mxu0 %v121
    %152 = vmatprep.subr.mxu0 0.0
    %153 = vmatpush1.msra.mxu0 %v122
    %154 = vmatprep.subr.mxu0 0.0
    %155 = vmatpush1.msra.mxu0 %v123
    %156 = vmatprep.subr.mxu0 0.0
    %157 = vmatpush1.msra.mxu0 0.0
    %158 = vmatprep.subr.mxu0 0.0
    %159 = vmatpush1.msra.mxu0 0.0
    %160 = vmatprep.subr.mxu0 0.0
    %161 = vmatpush1.msra.mxu0 0.0
    %162 = vmatprep.subr.mxu0 0.0
    %163 = vmatpush1.msra.mxu0 0.0
    %164 = vmatprep.subr.mxu0 0.0
    %165 = vmatpush1.msra.mxu0 0.0
    %166 = vmatprep.subr.mxu0 0.0
    %167 = vmatpush1.msra.mxu0 0.0
    %168 = vmatprep.subr.mxu0 0.0
    %169 = vmatpush1.msra.mxu0 0.0
    %170 = vmatprep.subr.mxu0 0.0
    %171 = vmatpush1.msra.mxu0 0.0
    %172 = vmatprep.subr.mxu0 0.0
    %173 = vmatpush1.msra.mxu0 0.0
    %174 = vmatprep.subr.mxu0 0.0
    %175 = vmatpush1.msra.mxu0 0.0
    %176 = vmatprep.subr.mxu0 0.0
    %177 = vmatpush1.msra.mxu0 0.0
    %178 = vmatprep.subr.mxu0 0.0
    %179 = vmatpush1.msra.mxu0 0.0
    %180 = vmatprep.subr.mxu0 0.0
    %181 = vmatpush1.msra.mxu0 0.0
    %182 = vmatprep.subr.mxu0 0.0
    %183 = vmatpush1.msra.mxu0 0.0
    %184 = vmatprep.subr.mxu0 0.0
    %185 = vmatpush1.msra.mxu0 0.0
    %186 = vmatprep.subr.mxu0 0.0
    %187 = vmatpush1.msra.mxu0 0.0
    %188 = vmatprep.mubr.f32.mxu0 0.0
    %189 = vmatmul.mubr.f32.gmra.mrb[0].mxu0 %v92
    %v190 = vpop.f32.mrb[0].mxu0
    %v191 = vadd.f32 0.0, %v190
    %v192 = vpop.f32.mrb[0].mxu0
    %193 = vmatprep.mubr.f32.mxu0 0.0
    %194 = vmatmul.mubr.f32.gmra.mrb[0].mxu0 %v93
    %v195 = vpop.f32.mrb[0].mxu0
    %v196 = vadd.f32 0.0, %v195
    %v197 = vpop.f32.mrb[0].mxu0
    %198 = vmatprep.mubr.f32.mxu0 0.0
    %199 = vmatmul.mubr.f32.gmra.mrb[0].mxu0 %v94
    %v200 = vpop.f32.mrb[0].mxu0
    %v201 = vadd.f32 0.0, %v200
    %v202 = vpop.f32.mrb[0].mxu0
    %203 = vmatprep.mubr.f32.mxu0 0.0
    %204 = vmatmul.mubr.f32.gmra.mrb[0].mxu0 %v95
    %v205 = vpop.f32.mrb[0].mxu0
    %v206 = vadd.f32 0.0, %v205
    %v207 = vpop.f32.mrb[0].mxu0
    %208 = vmatprep.mubr.f32.mxu0 0.0
    %209 = vmatmul.mubr.f32.gmra.mrb[0].mxu0 %v96
    %v210 = vpop.f32.mrb[0].mxu0
    %v211 = vadd.f32 0.0, %v210
    %v212 = vpop.f32.mrb[0].mxu0
    %213 = vmatprep.mubr.f32.mxu0 0.0
    %214 = vmatmul.mubr.f32.gmra.mrb[0].mxu0 %v97
    %v215 = vpop.f32.mrb[0].mxu0
    %v216 = vadd.f32 0.0, %v215
    %v217 = vpop.f32.mrb[0].mxu0
    %218 = vmatprep.mubr.f32.mxu0 0.0
    %219 = vmatmul.mubr.f32.gmra.mrb[0].mxu0 %v98
    %v220 = vpop.f32.mrb[0].mxu0
    %v221 = vadd.f32 0.0, %v220
    %v222 = vpop.f32.mrb[0].mxu0
    %223 = vmatprep.mubr.f32.mxu0 0.0
    %224 = vmatmul.mubr.f32.gmra.mrb[0].mxu0 %v99
    %v225 = vpop.f32.mrb[0].mxu0
    %v226 = vadd.f32 0.0, %v225
    %v227 = vpop.f32.mrb[0].mxu0
    %228 = vmatprep.mubr.f32.mxu0 0.0
    %229 = vmatmul.mubr.f32.gmra.mrb[0].mxu0 %v100
    %v230 = vpop.f32.mrb[0].mxu0
    %v231 = vadd.f32 0.0, %v230
    %v232 = vpop.f32.mrb[0].mxu0
    %233 = vmatprep.mubr.f32.mxu0 0.0
    %234 = vmatmul.mubr.f32.gmra.mrb[0].mxu0 %v101
    %v235 = vpop.f32.mrb[0].mxu0
    %v236 = vadd.f32 0.0, %v235
    %v237 = vpop.f32.mrb[0].mxu0
    %238 = vmatprep.mubr.f32.mxu0 0.0
    %239 = vmatmul.mubr.f32.gmra.mrb[0].mxu0 %v102
    %v240 = vpop.f32.mrb[0].mxu0
    %v241 = vadd.f32 0.0, %v240
    %v242 = vpop.f32.mrb[0].mxu0
    %243 = vmatprep.mubr.f32.mxu0 0.0
    %244 = vmatmul.mubr.f32.gmra.mrb[0].mxu0 %v103
    %v245 = vpop.f32.mrb[0].mxu0
    %v246 = vadd.f32 0.0, %v245
    %v247 = vpop.f32.mrb[0].mxu0
    %248 = vmatprep.mubr.f32.mxu0 0.0
    %249 = vmatmul.mubr.f32.gmra.mrb[0].mxu0 %v104
    %v250 = vpop.f32.mrb[0].mxu0
    %v251 = vadd.f32 0.0, %v250
    %v252 = vpop.f32.mrb[0].mxu0
    %253 = vmatprep.mubr.f32.mxu0 0.0
    %254 = vmatmul.mubr.f32.gmra.mrb[0].mxu0 %v105
    %v255 = vpop.f32.mrb[0].mxu0
    %v256 = vadd.f32 0.0, %v255
    %v257 = vpop.f32.mrb[0].mxu0
    %258 = vmatprep.mubr.f32.mxu0 0.0
    %259 = vmatmul.mubr.f32.gmra.mrb[0].mxu0 %v106
    %v260 = vpop.f32.mrb[0].mxu0
    %v261 = vadd.f32 0.0, %v260
    %v262 = vpop.f32.mrb[0].mxu0
    %263 = vmatprep.mubr.f32.mxu0 0.0
    %264 = vmatmul.mubr.f32.gmra.mrb[0].mxu0 %v107
    %v265 = vpop.f32.mrb[0].mxu0
    %v266 = vadd.f32 0.0, %v265
    %v267 = vpop.f32.mrb[0].mxu0
    %268 = vdwg.mxu0
    %v269 = vld [vmem:[#allocation3] sm:$0xf]
    %v270 = vld [vmem:[#allocation3 + $0x4] sm:$0xf]
    %v271 = vld [vmem:[#allocation3 + $0x8] sm:$0xf]
    %v272 = vld [vmem:[#allocation3 + $0xc] sm:$0xf]
    %v273 = vld [vmem:[#allocation3 + $0x10] sm:$0xf]
    %v274 = vld [vmem:[#allocation3 + $0x14] sm:$0xf]
    %v275 = vld [vmem:[#allocation3 + $0x18] sm:$0xf]
    %v276 = vld [vmem:[#allocation3 + $0x1c] sm:$0xf]
    %v277 = vld [vmem:[#allocation3 + $0x20] sm:$0xf]
    %v278 = vld [vmem:[#allocation3 + $0x24] sm:$0xf]
    %v279 = vld [vmem:[#allocation3 + $0x28] sm:$0xf]
    %v280 = vld [vmem:[#allocation3 + $0x2c] sm:$0xf]
    %v281 = vld [vmem:[#allocation3 + $0x30] sm:$0xf]
    %v282 = vld [vmem:[#allocation3 + $0x34] sm:$0xf]
    %v283 = vld [vmem:[#allocation3 + $0x38] sm:$0xf]
    %v284 = vld [vmem:[#allocation3 + $0x3c] sm:$0xf]
    %v285 = vpack.c.bf16 %v196, %v191
    %v286 = vpack.c.bf16 %v206, %v201
    %v287 = vpack.c.bf16 %v216, %v211
    %v288 = vpack.c.bf16 %v226, %v221
    %v289 = vpack.c.bf16 %v236, %v231
    %v290 = vpack.c.bf16 %v246, %v241
    %v291 = vpack.c.bf16 %v256, %v251
    %v292 = vpack.c.bf16 %v266, %v261
    %v293 = vld [vmem:[%s3] sm:$0x1]
    %v295 = vlaneseq
    %v296 = vshrl.u32 %v295, 7
    %v297 = vsub.s32 0, %v296
    %v298 = vrot.slane %v293, %v297
    %v316 = vunpack.c.l.b16 %v269
    %v317 = vunpack.c.l.b16 %v270
    %v318 = vunpack.c.l.b16 %v271
    %v319 = vunpack.c.l.b16 %v272
    %v320 = vunpack.c.l.b16 %v273
    %v321 = vunpack.c.l.b16 %v274
    %v322 = vunpack.c.l.b16 %v275
    %v323 = vunpack.c.l.b16 %v276
    %v324 = vunpack.c.l.b16 %v277
    %v325 = vunpack.c.l.b16 %v278
    %v326 = vunpack.c.l.b16 %v279
    %v327 = vunpack.c.l.b16 %v280
    %v328 = vunpack.c.l.b16 %v281
    %v329 = vunpack.c.l.b16 %v282
    %v330 = vunpack.c.l.b16 %v283
    %v331 = vunpack.c.l.b16 %v284
    %v332 = vpack.c.b16 %v317, %v316
    %v333 = vpack.c.b16 %v319, %v318
    %v334 = vpack.c.b16 %v321, %v320
    %v335 = vpack.c.b16 %v323, %v322
    %v336 = vpack.c.b16 %v325, %v324
    %v337 = vpack.c.b16 %v327, %v326
    %v338 = vpack.c.b16 %v329, %v328
    %v339 = vpack.c.b16 %v331, %v330
    %348 = vmatprep.subr.bf16.mxu0 0
    %349 = vmatpush1.bf16.msra.mxu0 %v285
    %350 = vmatprep.subr.bf16.mxu0 0
    %351 = vmatpush1.bf16.msra.mxu0 %v286
    %352 = vmatprep.subr.bf16.mxu0 0
    %353 = vmatpush1.bf16.msra.mxu0 %v287
    %354 = vmatprep.subr.bf16.mxu0 0
    %355 = vmatpush1.bf16.msra.mxu0 %v288
    %356 = vmatprep.subr.bf16.mxu0 0
    %357 = vmatpush1.bf16.msra.mxu0 %v289
    %358 = vmatprep.subr.bf16.mxu0 0
    %359 = vmatpush1.bf16.msra.mxu0 %v290
    %360 = vmatprep.subr.bf16.mxu0 0
    %361 = vmatpush1.bf16.msra.mxu0 %v291
    %362 = vmatprep.subr.bf16.mxu0 0
    %363 = vmatpush1.bf16.msra.mxu0 %v292
    %364 = vmatprep.subr.bf16.mxu0 0
    %365 = vmatpush1.bf16.msra.mxu0 0
    %366 = vmatprep.subr.bf16.mxu0 0
    %367 = vmatpush1.bf16.msra.mxu0 0
    %368 = vmatprep.subr.bf16.mxu0 0
    %369 = vmatpush1.bf16.msra.mxu0 0
    %370 = vmatprep.subr.bf16.mxu0 0
    %371 = vmatpush1.bf16.msra.mxu0 0
    %372 = vmatprep.subr.bf16.mxu0 0
    %373 = vmatpush1.bf16.msra.mxu0 0
    %374 = vmatprep.subr.bf16.mxu0 0
    %375 = vmatpush1.bf16.msra.mxu0 0
    %376 = vmatprep.subr.bf16.mxu0 0
    %377 = vmatpush1.bf16.msra.mxu0 0
    %378 = vmatprep.subr.bf16.mxu0 0
    %379 = vmatpush1.bf16.msra.mxu0 0
    %380 = vmatprep.mubr.bf16.mxu0 0
    %381 = vmatmul.mubr.bf16.gmra.mrb[0].mxu0 %v332
    %v382 = vpop.f32.mrb[0].mxu0
    %v383 = vadd.f32 %v298, %v382
    %v384 = vpop.f32.mrb[0].mxu0
    %v385 = vpop.f32.mrb[0].mxu0
    %v386 = vadd.f32 %v298, %v385
    %v387 = vpop.f32.mrb[0].mxu0
    %388 = vmatprep.mubr.bf16.mxu0 0
    %389 = vmatmul.mubr.bf16.gmra.mrb[0].mxu0 %v333
    %v390 = vpop.f32.mrb[0].mxu0
    %v391 = vadd.f32 %v298, %v390
    %v392 = vpop.f32.mrb[0].mxu0
    %v393 = vpop.f32.mrb[0].mxu0
    %v394 = vadd.f32 %v298, %v393
    %v395 = vpop.f32.mrb[0].mxu0
    %396 = vmatprep.mubr.bf16.mxu0 0
    %397 = vmatmul.mubr.bf16.gmra.mrb[0].mxu0 %v334
    %v398 = vpop.f32.mrb[0].mxu0
    %v399 = vadd.f32 %v298, %v398
    %v400 = vpop.f32.mrb[0].mxu0
    %v401 = vpop.f32.mrb[0].mxu0
    %v402 = vadd.f32 %v298, %v401
    %v403 = vpop.f32.mrb[0].mxu0
    %404 = vmatprep.mubr.bf16.mxu0 0
    %405 = vmatmul.mubr.bf16.gmra.mrb[0].mxu0 %v335
    %v406 = vpop.f32.mrb[0].mxu0
    %v407 = vadd.f32 %v298, %v406
    %v408 = vpop.f32.mrb[0].mxu0
    %v409 = vpop.f32.mrb[0].mxu0
    %v410 = vadd.f32 %v298, %v409
    %v411 = vpop.f32.mrb[0].mxu0
    %412 = vmatprep.mubr.bf16.mxu0 0
    %413 = vmatmul.mubr.bf16.gmra.mrb[0].mxu0 %v336
    %v414 = vpop.f32.mrb[0].mxu0
    %v415 = vadd.f32 %v298, %v414
    %v416 = vpop.f32.mrb[0].mxu0
    %v417 = vpop.f32.mrb[0].mxu0
    %v418 = vadd.f32 %v298, %v417
    %v419 = vpop.f32.mrb[0].mxu0
    %420 = vmatprep.mubr.bf16.mxu0 0
    %421 = vmatmul.mubr.bf16.gmra.mrb[0].mxu0 %v337
    %v422 = vpop.f32.mrb[0].mxu0
    %v423 = vadd.f32 %v298, %v422
    %v424 = vpop.f32.mrb[0].mxu0
    %v425 = vpop.f32.mrb[0].mxu0
    %v426 = vadd.f32 %v298, %v425
    %v427 = vpop.f32.mrb[0].mxu0
    %428 = vmatprep.mubr.bf16.mxu0 0
    %429 = vmatmul.mubr.bf16.gmra.mrb[0].mxu0 %v338
    %v430 = vpop.f32.mrb[0].mxu0
    %v431 = vadd.f32 %v298, %v430
    %v432 = vpop.f32.mrb[0].mxu0
    %v433 = vpop.f32.mrb[0].mxu0
    %v434 = vadd.f32 %v298, %v433
    %v435 = vpop.f32.mrb[0].mxu0
    %436 = vmatprep.mubr.bf16.mxu0 0
    %437 = vmatmul.mubr.bf16.gmra.mrb[0].mxu0 %v339
    %v438 = vpop.f32.mrb[0].mxu0
    %v439 = vadd.f32 %v298, %v438
    %v440 = vpop.f32.mrb[0].mxu0
    %v441 = vpop.f32.mrb[0].mxu0
    %v442 = vadd.f32 %v298, %v441
    %v443 = vpop.f32.mrb[0].mxu0
    %444 = vdwg.mxu0
    %445 = vst [vmem:[#allocation2] sm:$0xff] %v383
    %446 = vst [vmem:[#allocation2 + $0x8] sm:$0xff] %v386
    %447 = vst [vmem:[#allocation2 + $0x10] sm:$0xff] %v391
    %448 = vst [vmem:[#allocation2 + $0x18] sm:$0xff] %v394
    %449 = vst [vmem:[#allocation2 + $0x20] sm:$0xff] %v399
    %450 = vst [vmem:[#allocation2 + $0x28] sm:$0xff] %v402
    %451 = vst [vmem:[#allocation2 + $0x30] sm:$0xff] %v407
    %452 = vst [vmem:[#allocation2 + $0x38] sm:$0xff] %v410
    %453 = vst [vmem:[#allocation2 + $0x40] sm:$0xff] %v415
    %454 = vst [vmem:[#allocation2 + $0x48] sm:$0xff] %v418
    %455 = vst [vmem:[#allocation2 + $0x50] sm:$0xff] %v423
    %456 = vst [vmem:[#allocation2 + $0x58] sm:$0xff] %v426
    %457 = vst [vmem:[#allocation2 + $0x60] sm:$0xff] %v431
    %458 = vst [vmem:[#allocation2 + $0x68] sm:$0xff] %v434
    %459 = vst [vmem:[#allocation2 + $0x70] sm:$0xff] %v439
    %460 = vst [vmem:[#allocation2 + $0x78] sm:$0xff] %v442
    %v461 = vld [vmem:[#allocation2] sm:$0xff]
    %v462 = vld [vmem:[#allocation2 + $0x8] sm:$0xff]
    %v463 = vld [vmem:[#allocation2 + $0x10] sm:$0xff]
    %v464 = vld [vmem:[#allocation2 + $0x18] sm:$0xff]
    %v465 = vld [vmem:[#allocation2 + $0x20] sm:$0xff]
    %v466 = vld [vmem:[#allocation2 + $0x28] sm:$0xff]
    %v467 = vld [vmem:[#allocation2 + $0x30] sm:$0xff]
    %v468 = vld [vmem:[#allocation2 + $0x38] sm:$0xff]
    %v469 = vld [vmem:[#allocation2 + $0x40] sm:$0xff]
    %v470 = vld [vmem:[#allocation2 + $0x48] sm:$0xff]
    %v471 = vld [vmem:[#allocation2 + $0x50] sm:$0xff]
    %v472 = vld [vmem:[#allocation2 + $0x58] sm:$0xff]
    %v473 = vld [vmem:[#allocation2 + $0x60] sm:$0xff]
    %v474 = vld [vmem:[#allocation2 + $0x68] sm:$0xff]
    %v475 = vld [vmem:[#allocation2 + $0x70] sm:$0xff]
    %v476 = vld [vmem:[#allocation2 + $0x78] sm:$0xff]
    %s477 = scalar_lea.vmem [#allocation8], 128
    %v478 = vld [vmem:[%s477] sm:$0xff]
    %v479 = vld [vmem:[%s477 + $0x8] sm:$0xff]
    %v480 = vld [vmem:[%s477 + $0x10] sm:$0xff]
    %v481 = vld [vmem:[%s477 + $0x18] sm:$0xff]
    %v482 = vld [vmem:[%s477 + $0x20] sm:$0xff]
    %v483 = vld [vmem:[%s477 + $0x28] sm:$0xff]
    %v484 = vld [vmem:[%s477 + $0x30] sm:$0xff]
    %v485 = vld [vmem:[%s477 + $0x38] sm:$0xff]
    %v486 = vld [vmem:[%s477 + $0x40] sm:$0xff]
    %v487 = vld [vmem:[%s477 + $0x48] sm:$0xff]
    %v488 = vld [vmem:[%s477 + $0x50] sm:$0xff]
    %v489 = vld [vmem:[%s477 + $0x58] sm:$0xff]
    %v490 = vld [vmem:[%s477 + $0x60] sm:$0xff]
    %v491 = vld [vmem:[%s477 + $0x68] sm:$0xff]
    %v492 = vld [vmem:[%s477 + $0x70] sm:$0xff]
    %v493 = vld [vmem:[%s477 + $0x78] sm:$0xff]
    %494 = vmatprep.subr.mxu0 0.0
    %495 = vmatpush1.msra.mxu0 %v478
    %496 = vmatprep.subr.mxu0 0.0
    %497 = vmatpush1.msra.mxu0 %v479
    %498 = vmatprep.subr.mxu0 0.0
    %499 = vmatpush1.msra.mxu0 %v480
    %500 = vmatprep.subr.mxu0 0.0
    %501 = vmatpush1.msra.mxu0 %v481
    %502 = vmatprep.subr.mxu0 0.0
    %503 = vmatpush1.msra.mxu0 %v482
    %504 = vmatprep.subr.mxu0 0.0
    %505 = vmatpush1.msra.mxu0 %v483
    %506 = vmatprep.subr.mxu0 0.0
    %507 = vmatpush1.msra.mxu0 %v484
    %508 = vmatprep.subr.mxu0 0.0
    %509 = vmatpush1.msra.mxu0 %v485
    %510 = vmatprep.subr.mxu0 0.0
    %511 = vmatpush1.msra.mxu0 %v486
    %512 = vmatprep.subr.mxu0 0.0
    %513 = vmatpush1.msra.mxu0 %v487
    %514 = vmatprep.subr.mxu0 0.0
    %515 = vmatpush1.msra.mxu0 %v488
    %516 = vmatprep.subr.mxu0 0.0
    %517 = vmatpush1.msra.mxu0 %v489
    %518 = vmatprep.subr.mxu0 0.0
    %519 = vmatpush1.msra.mxu0 %v490
    %520 = vmatprep.subr.mxu0 0.0
    %521 = vmatpush1.msra.mxu0 %v491
    %522 = vmatprep.subr.mxu0 0.0
    %523 = vmatpush1.msra.mxu0 %v492
    %524 = vmatprep.subr.mxu0 0.0
    %525 = vmatpush1.msra.mxu0 %v493
    %526 = vmatprep.subr.mxu0 0.0
    %527 = vmatpush1.msra.mxu0 0.0
    %528 = vmatprep.subr.mxu0 0.0
    %529 = vmatpush1.msra.mxu0 0.0
    %530 = vmatprep.subr.mxu0 0.0
    %531 = vmatpush1.msra.mxu0 0.0
    %532 = vmatprep.subr.mxu0 0.0
    %533 = vmatpush1.msra.mxu0 0.0
    %534 = vmatprep.subr.mxu0 0.0
    %535 = vmatpush1.msra.mxu0 0.0
    %536 = vmatprep.subr.mxu0 0.0
    %537 = vmatpush1.msra.mxu0 0.0
    %538 = vmatprep.subr.mxu0 0.0
    %539 = vmatpush1.msra.mxu0 0.0
    %540 = vmatprep.subr.mxu0 0.0
    %541 = vmatpush1.msra.mxu0 0.0
    %542 = vmatprep.subr.mxu0 0.0
    %543 = vmatpush1.msra.mxu0 0.0
    %544 = vmatprep.subr.mxu0 0.0
    %545 = vmatpush1.msra.mxu0 0.0
    %546 = vmatprep.subr.mxu0 0.0
    %547 = vmatpush1.msra.mxu0 0.0
    %548 = vmatprep.subr.mxu0 0.0
    %549 = vmatpush1.msra.mxu0 0.0
    %550 = vmatprep.subr.mxu0 0.0
    %551 = vmatpush1.msra.mxu0 0.0
    %552 = vmatprep.subr.mxu0 0.0
    %553 = vmatpush1.msra.mxu0 0.0
    %554 = vmatprep.subr.mxu0 0.0
    %555 = vmatpush1.msra.mxu0 0.0
    %556 = vmatprep.subr.mxu0 0.0
    %557 = vmatpush1.msra.mxu0 0.0
    %558 = vmatprep.mubr.f32.mxu0 0.0
    %559 = vmatmul.mubr.f32.gmra.mrb[0].mxu0 %v461
    %v560 = vpop.f32.mrb[0].mxu0
    %v561 = vadd.f32 0.0, %v560
    %v562 = vpop.f32.mrb[0].mxu0
    %563 = vmatprep.mubr.f32.mxu0 0.0
    %564 = vmatmul.mubr.f32.gmra.mrb[0].mxu0 %v462
    %v565 = vpop.f32.mrb[0].mxu0
    %v566 = vadd.f32 0.0, %v565
    %v567 = vpop.f32.mrb[0].mxu0
    %568 = vmatprep.mubr.f32.mxu0 0.0
    %569 = vmatmul.mubr.f32.gmra.mrb[0].mxu0 %v463
    %v570 = vpop.f32.mrb[0].mxu0
    %v571 = vadd.f32 0.0, %v570
    %v572 = vpop.f32.mrb[0].mxu0
    %573 = vmatprep.mubr.f32.mxu0 0.0
    %574 = vmatmul.mubr.f32.gmra.mrb[0].mxu0 %v464
    %v575 = vpop.f32.mrb[0].mxu0
    %v576 = vadd.f32 0.0, %v575
    %v577 = vpop.f32.mrb[0].mxu0
    %578 = vmatprep.mubr.f32.mxu0 0.0
    %579 = vmatmul.mubr.f32.gmra.mrb[0].mxu0 %v465
    %v580 = vpop.f32.mrb[0].mxu0
    %v581 = vadd.f32 0.0, %v580
    %v582 = vpop.f32.mrb[0].mxu0
    %583 = vmatprep.mubr.f32.mxu0 0.0
    %584 = vmatmul.mubr.f32.gmra.mrb[0].mxu0 %v466
    %v585 = vpop.f32.mrb[0].mxu0
    %v586 = vadd.f32 0.0, %v585
    %v587 = vpop.f32.mrb[0].mxu0
    %588 = vmatprep.mubr.f32.mxu0 0.0
    %589 = vmatmul.mubr.f32.gmra.mrb[0].mxu0 %v467
    %v590 = vpop.f32.mrb[0].mxu0
    %v591 = vadd.f32 0.0, %v590
    %v592 = vpop.f32.mrb[0].mxu0
    %593 = vmatprep.mubr.f32.mxu0 0.0
    %594 = vmatmul.mubr.f32.gmra.mrb[0].mxu0 %v468
    %v595 = vpop.f32.mrb[0].mxu0
    %v596 = vadd.f32 0.0, %v595
    %v597 = vpop.f32.mrb[0].mxu0
    %598 = vmatprep.mubr.f32.mxu0 0.0
    %599 = vmatmul.mubr.f32.gmra.mrb[0].mxu0 %v469
    %v600 = vpop.f32.mrb[0].mxu0
    %v601 = vadd.f32 0.0, %v600
    %v602 = vpop.f32.mrb[0].mxu0
    %603 = vmatprep.mubr.f32.mxu0 0.0
    %604 = vmatmul.mubr.f32.gmra.mrb[0].mxu0 %v470
    %v605 = vpop.f32.mrb[0].mxu0
    %v606 = vadd.f32 0.0, %v605
    %v607 = vpop.f32.mrb[0].mxu0
    %608 = vmatprep.mubr.f32.mxu0 0.0
    %609 = vmatmul.mubr.f32.gmra.mrb[0].mxu0 %v471
    %v610 = vpop.f32.mrb[0].mxu0
    %v611 = vadd.f32 0.0, %v610
    %v612 = vpop.f32.mrb[0].mxu0
    %613 = vmatprep.mubr.f32.mxu0 0.0
    %614 = vmatmul.mubr.f32.gmra.mrb[0].mxu0 %v472
    %v615 = vpop.f32.mrb[0].mxu0
    %v616 = vadd.f32 0.0, %v615
    %v617 = vpop.f32.mrb[0].mxu0
    %618 = vmatprep.mubr.f32.mxu0 0.0
    %619 = vmatmul.mubr.f32.gmra.mrb[0].mxu0 %v473
    %v620 = vpop.f32.mrb[0].mxu0
    %v621 = vadd.f32 0.0, %v620
    %v622 = vpop.f32.mrb[0].mxu0
    %623 = vmatprep.mubr.f32.mxu0 0.0
    %624 = vmatmul.mubr.f32.gmra.mrb[0].mxu0 %v474
    %v625 = vpop.f32.mrb[0].mxu0
    %v626 = vadd.f32 0.0, %v625
    %v627 = vpop.f32.mrb[0].mxu0
    %628 = vmatprep.mubr.f32.mxu0 0.0
    %629 = vmatmul.mubr.f32.gmra.mrb[0].mxu0 %v475
    %v630 = vpop.f32.mrb[0].mxu0
    %v631 = vadd.f32 0.0, %v630
    %v632 = vpop.f32.mrb[0].mxu0
    %633 = vmatprep.mubr.f32.mxu0 0.0
    %634 = vmatmul.mubr.f32.gmra.mrb[0].mxu0 %v476
    %v635 = vpop.f32.mrb[0].mxu0
    %v636 = vadd.f32 0.0, %v635
    %v637 = vpop.f32.mrb[0].mxu0
    %638 = vdwg.mxu0
    %v639 = vld [vmem:[#allocation3] sm:$0xf]
    %v640 = vld [vmem:[#allocation3 + $0x4] sm:$0xf]
    %v641 = vld [vmem:[#allocation3 + $0x8] sm:$0xf]
    %v642 = vld [vmem:[#allocation3 + $0xc] sm:$0xf]
    %v643 = vld [vmem:[#allocation3 + $0x10] sm:$0xf]
    %v644 = vld [vmem:[#allocation3 + $0x14] sm:$0xf]
    %v645 = vld [vmem:[#allocation3 + $0x18] sm:$0xf]
    %v646 = vld [vmem:[#allocation3 + $0x1c] sm:$0xf]
    %v647 = vld [vmem:[#allocation3 + $0x20] sm:$0xf]
    %v648 = vld [vmem:[#allocation3 + $0x24] sm:$0xf]
    %v649 = vld [vmem:[#allocation3 + $0x28] sm:$0xf]
    %v650 = vld [vmem:[#allocation3 + $0x2c] sm:$0xf]
    %v651 = vld [vmem:[#allocation3 + $0x30] sm:$0xf]
    %v652 = vld [vmem:[#allocation3 + $0x34] sm:$0xf]
    %v653 = vld [vmem:[#allocation3 + $0x38] sm:$0xf]
    %v654 = vld [vmem:[#allocation3 + $0x3c] sm:$0xf]
    %v655 = vpack.c.bf16 %v566, %v561
    %v656 = vpack.c.bf16 %v576, %v571
    %v657 = vpack.c.bf16 %v586, %v581
    %v658 = vpack.c.bf16 %v596, %v591
    %v659 = vpack.c.bf16 %v606, %v601
    %v660 = vpack.c.bf16 %v616, %v611
    %v661 = vpack.c.bf16 %v626, %v621
    %v662 = vpack.c.bf16 %v636, %v631
    %s663 = scalar_lea.vmem %s3, 1
    %v664 = vld [vmem:[%s663] sm:$0x1]
    %v666 = vlaneseq
    %v667 = vshrl.u32 %v666, 7
    %v668 = vsub.s32 0, %v667
    %v669 = vrot.slane %v664, %v668
    %v687 = vunpack.c.l.b16 %v639
    %v688 = vunpack.c.l.b16 %v640
    %v689 = vunpack.c.l.b16 %v641
    %v690 = vunpack.c.l.b16 %v642
    %v691 = vunpack.c.l.b16 %v643
    %v692 = vunpack.c.l.b16 %v644
    %v693 = vunpack.c.l.b16 %v645
    %v694 = vunpack.c.l.b16 %v646
    %v695 = vunpack.c.l.b16 %v647
    %v696 = vunpack.c.l.b16 %v648
    %v697 = vunpack.c.l.b16 %v649
    %v698 = vunpack.c.l.b16 %v650
    %v699 = vunpack.c.l.b16 %v651
    %v700 = vunpack.c.l.b16 %v652
    %v701 = vunpack.c.l.b16 %v653
    %v702 = vunpack.c.l.b16 %v654
    %v703 = vpack.c.b16 %v688, %v687
    %v704 = vpack.c.b16 %v690, %v689
    %v705 = vpack.c.b16 %v692, %v691
    %v706 = vpack.c.b16 %v694, %v693
    %v707 = vpack.c.b16 %v696, %v695
    %v708 = vpack.c.b16 %v698, %v697
    %v709 = vpack.c.b16 %v700, %v699
    %v710 = vpack.c.b16 %v702, %v701
    %719 = vmatprep.subr.bf16.mxu0 0
    %720 = vmatpush1.bf16.msra.mxu0 %v655
    %721 = vmatprep.subr.bf16.mxu0 0
    %722 = vmatpush1.bf16.msra.mxu0 %v656
    %723 = vmatprep.subr.bf16.mxu0 0
    %724 = vmatpush1.bf16.msra.mxu0 %v657
    %725 = vmatprep.subr.bf16.mxu0 0
    %726 = vmatpush1.bf16.msra.mxu0 %v658
    %727 = vmatprep.subr.bf16.mxu0 0
    %728 = vmatpush1.bf16.msra.mxu0 %v659
    %729 = vmatprep.subr.bf16.mxu0 0
    %730 = vmatpush1.bf16.msra.mxu0 %v660
    %731 = vmatprep.subr.bf16.mxu0 0
    %732 = vmatpush1.bf16.msra.mxu0 %v661
    %733 = vmatprep.subr.bf16.mxu0 0
    %734 = vmatpush1.bf16.msra.mxu0 %v662
    %735 = vmatprep.subr.bf16.mxu0 0
    %736 = vmatpush1.bf16.msra.mxu0 0
    %737 = vmatprep.subr.bf16.mxu0 0
    %738 = vmatpush1.bf16.msra.mxu0 0
    %739 = vmatprep.subr.bf16.mxu0 0
    %740 = vmatpush1.bf16.msra.mxu0 0
    %741 = vmatprep.subr.bf16.mxu0 0
    %742 = vmatpush1.bf16.msra.mxu0 0
    %743 = vmatprep.subr.bf16.mxu0 0
    %744 = vmatpush1.bf16.msra.mxu0 0
    %745 = vmatprep.subr.bf16.mxu0 0
    %746 = vmatpush1.bf16.msra.mxu0 0
    %747 = vmatprep.subr.bf16.mxu0 0
    %748 = vmatpush1.bf16.msra.mxu0 0
    %749 = vmatprep.subr.bf16.mxu0 0
    %750 = vmatpush1.bf16.msra.mxu0 0
    %751 = vmatprep.mubr.bf16.mxu0 0
    %752 = vmatmul.mubr.bf16.gmra.mrb[0].mxu0 %v703
    %v753 = vpop.f32.mrb[0].mxu0
    %v754 = vadd.f32 %v669, %v753
    %v755 = vpop.f32.mrb[0].mxu0
    %v756 = vpop.f32.mrb[0].mxu0
    %v757 = vadd.f32 %v669, %v756
    %v758 = vpop.f32.mrb[0].mxu0
    %759 = vmatprep.mubr.bf16.mxu0 0
    %760 = vmatmul.mubr.bf16.gmra.mrb[0].mxu0 %v704
    %v761 = vpop.f32.mrb[0].mxu0
    %v762 = vadd.f32 %v669, %v761
    %v763 = vpop.f32.mrb[0].mxu0
    %v764 = vpop.f32.mrb[0].mxu0
    %v765 = vadd.f32 %v669, %v764
    %v766 = vpop.f32.mrb[0].mxu0
    %767 = vmatprep.mubr.bf16.mxu0 0
    %768 = vmatmul.mubr.bf16.gmra.mrb[0].mxu0 %v705
    %v769 = vpop.f32.mrb[0].mxu0
    %v770 = vadd.f32 %v669, %v769
    %v771 = vpop.f32.mrb[0].mxu0
    %v772 = vpop.f32.mrb[0].mxu0
    %v773 = vadd.f32 %v669, %v772
    %v774 = vpop.f32.mrb[0].mxu0
    %775 = vmatprep.mubr.bf16.mxu0 0
    %776 = vmatmul.mubr.bf16.gmra.mrb[0].mxu0 %v706
    %v777 = vpop.f32.mrb[0].mxu0
    %v778 = vadd.f32 %v669, %v777
    %v779 = vpop.f32.mrb[0].mxu0
    %v780 = vpop.f32.mrb[0].mxu0
    %v781 = vadd.f32 %v669, %v780
    %v782 = vpop.f32.mrb[0].mxu0
    %783 = vmatprep.mubr.bf16.mxu0 0
    %784 = vmatmul.mubr.bf16.gmra.mrb[0].mxu0 %v707
    %v785 = vpop.f32.mrb[0].mxu0
    %v786 = vadd.f32 %v669, %v785
    %v787 = vpop.f32.mrb[0].mxu0
    %v788 = vpop.f32.mrb[0].mxu0
    %v789 = vadd.f32 %v669, %v788
    %v790 = vpop.f32.mrb[0].mxu0
    %791 = vmatprep.mubr.bf16.mxu0 0
    %792 = vmatmul.mubr.bf16.gmra.mrb[0].mxu0 %v708
    %v793 = vpop.f32.mrb[0].mxu0
    %v794 = vadd.f32 %v669, %v793
    %v795 = vpop.f32.mrb[0].mxu0
    %v796 = vpop.f32.mrb[0].mxu0
    %v797 = vadd.f32 %v669, %v796
    %v798 = vpop.f32.mrb[0].mxu0
    %799 = vmatprep.mubr.bf16.mxu0 0
    %800 = vmatmul.mubr.bf16.gmra.mrb[0].mxu0 %v709
    %v801 = vpop.f32.mrb[0].mxu0
    %v802 = vadd.f32 %v669, %v801
    %v803 = vpop.f32.mrb[0].mxu0
    %v804 = vpop.f32.mrb[0].mxu0
    %v805 = vadd.f32 %v669, %v804
    %v806 = vpop.f32.mrb[0].mxu0
    %807 = vmatprep.mubr.bf16.mxu0 0
    %808 = vmatmul.mubr.bf16.gmra.mrb[0].mxu0 %v710
    %v809 = vpop.f32.mrb[0].mxu0
    %v810 = vadd.f32 %v669, %v809
    %v811 = vpop.f32.mrb[0].mxu0
    %v812 = vpop.f32.mrb[0].mxu0
    %v813 = vadd.f32 %v669, %v812
    %v814 = vpop.f32.mrb[0].mxu0
    %815 = vdwg.mxu0
    %816 = vst [vmem:[#allocation2] sm:$0xff] %v754
    %817 = vst [vmem:[#allocation2 + $0x8] sm:$0xff] %v757
    %818 = vst [vmem:[#allocation2 + $0x10] sm:$0xff] %v762
    %819 = vst [vmem:[#allocation2 + $0x18] sm:$0xff] %v765
    %820 = vst [vmem:[#allocation2 + $0x20] sm:$0xff] %v770
    %821 = vst [vmem:[#allocation2 + $0x28] sm:$0xff] %v773
    %822 = vst [vmem:[#allocation2 + $0x30] sm:$0xff] %v778
    %823 = vst [vmem:[#allocation2 + $0x38] sm:$0xff] %v781
    %824 = vst [vmem:[#allocation2 + $0x40] sm:$0xff] %v786
    %825 = vst [vmem:[#allocation2 + $0x48] sm:$0xff] %v789
    %826 = vst [vmem:[#allocation2 + $0x50] sm:$0xff] %v794
    %827 = vst [vmem:[#allocation2 + $0x58] sm:$0xff] %v797
    %828 = vst [vmem:[#allocation2 + $0x60] sm:$0xff] %v802
    %829 = vst [vmem:[#allocation2 + $0x68] sm:$0xff] %v805
    %830 = vst [vmem:[#allocation2 + $0x70] sm:$0xff] %v810
    %831 = vst [vmem:[#allocation2 + $0x78] sm:$0xff] %v813
    %v832 = vld [vmem:[#allocation2] sm:$0xff]
    %v833 = vld [vmem:[#allocation2 + $0x8] sm:$0xff]
    %v834 = vld [vmem:[#allocation2 + $0x10] sm:$0xff]
    %v835 = vld [vmem:[#allocation2 + $0x18] sm:$0xff]
    %v836 = vld [vmem:[#allocation2 + $0x20] sm:$0xff]
    %v837 = vld [vmem:[#allocation2 + $0x28] sm:$0xff]
    %v838 = vld [vmem:[#allocation2 + $0x30] sm:$0xff]
    %v839 = vld [vmem:[#allocation2 + $0x38] sm:$0xff]
    %v840 = vld [vmem:[#allocation2 + $0x40] sm:$0xff]
    %v841 = vld [vmem:[#allocation2 + $0x48] sm:$0xff]
    %v842 = vld [vmem:[#allocation2 + $0x50] sm:$0xff]
    %v843 = vld [vmem:[#allocation2 + $0x58] sm:$0xff]
    %v844 = vld [vmem:[#allocation2 + $0x60] sm:$0xff]
    %v845 = vld [vmem:[#allocation2 + $0x68] sm:$0xff]
    %v846 = vld [vmem:[#allocation2 + $0x70] sm:$0xff]
    %v847 = vld [vmem:[#allocation2 + $0x78] sm:$0xff]
    %848 = vst [vmem:[#allocation9] sm:$0xff] %v832
    %849 = vst [vmem:[#allocation9 + $0x8] sm:$0xff] %v833
    %850 = vst [vmem:[#allocation9 + $0x10] sm:$0xff] %v834
    %851 = vst [vmem:[#allocation9 + $0x18] sm:$0xff] %v835
    %852 = vst [vmem:[#allocation9 + $0x20] sm:$0xff] %v836
    %853 = vst [vmem:[#allocation9 + $0x28] sm:$0xff] %v837
    %854 = vst [vmem:[#allocation9 + $0x30] sm:$0xff] %v838
    %855 = vst [vmem:[#allocation9 + $0x38] sm:$0xff] %v839
    %856 = vst [vmem:[#allocation9 + $0x40] sm:$0xff] %v840
    %857 = vst [vmem:[#allocation9 + $0x48] sm:$0xff] %v841
    %858 = vst [vmem:[#allocation9 + $0x50] sm:$0xff] %v842
    %859 = vst [vmem:[#allocation9 + $0x58] sm:$0xff] %v843
    %860 = vst [vmem:[#allocation9 + $0x60] sm:$0xff] %v844
    %861 = vst [vmem:[#allocation9 + $0x68] sm:$0xff] %v845
    %862 = vst [vmem:[#allocation9 + $0x70] sm:$0xff] %v846
    %863 = vst [vmem:[#allocation9 + $0x78] sm:$0xff] %v847
    // Predicated region
    $region30: #{tpu_custom_call.1} parent=1 // pred_check
      _
    $region31: #{tpu_custom_call.1} parent=1 // pred_check_branch
      %865 = sbr.rel (0) target = $region33
    $region32: #{tpu_custom_call.1} parent=1 // pred_region
      %s867 = ssub.s32 2048, 2048
      %868 = vsyncadd [#allocation5], %s867
      %s869 = sshll.u32 [#allocation9], 4
      %s870 = int_to_ptr.vmem [resolvable:$true] %s869
      %875 = dma.vmem_to_hbm [thread:$0]  %s870, 2048, %s4, [#allocation5], 128, 128, 8
    $region33: #{tpu_custom_call.1} parent=1 // pred_fallthru
      _
    // Predicated region
    $region34: #{tpu_custom_call.1} parent=1 // pred_check
      _
    $region35: #{tpu_custom_call.1} parent=1 // pred_check_branch
      %877 = sbr.rel (0) target = $region37
    $region36: #{tpu_custom_call.1} parent=1 // pred_region
      %878 = dma.done [#allocation5], 2048
    $region37: #{tpu_custom_call.1} parent=1 // pred_fallthru
      _
    %879 = vsyncpa [#allocation4], 1
    %880 = vsyncpa [#allocation7], 1
    %881 = vsyncpa [#allocation5], 1

</llo_original>
